<compile_context>
chip_gen: v6e
topology: v6e:2x2x1
jax: 0.10.0
libtpu: 0.0.40
codegen_flags: <defaults>
</compile_context>

<pallas_src>
import functools

import jax
import jax.numpy as jnp
from jax import lax
from jax.experimental import pallas as pl
from jax.experimental.pallas import tpu as pltpu

F32 = jnp.float32
BF16 = jnp.bfloat16
HIGHEST = lax.Precision.HIGHEST  # reference only


def _round_up(x, m):
    return ((x + m - 1) // m) * m


@functools.lru_cache(maxsize=1)
def _vmem_limit_bytes():
    """Per-generation VMEM budget: ~96 MiB on v5e/v6e (128 MiB), ~48 MiB on v7x (64 MiB)."""
    try:
        cap = int(pltpu.get_tpu_info().vmem_capacity_bytes)
    except Exception:
        cap = 64 * 1024 * 1024
    return int(min(cap * 3 // 4, 112 * 1024 * 1024))


def _auto_edge_tile(N, DQ, DKV, DE, OP, PW, vmem_limit):
    """Largest edge tile whose per-tile footprint fits the VMEM budget."""
    # resident: QS/KVS bf16 (double-buffered), acc block f32, small constants
    resident = 2 * 2 * N * (DQ + DKV) + 4 * N * PW + (1 << 20)
    avail = max(vmem_limit // 2 - resident, 2 << 20)
    per_edge = (4 * N                         # in-kernel Gd+Gs one-hots (bf16)
                + 2 * 4 * (DE + OP)           # double-buffered EWB stream + Oe slab
                + 4 * (DQ + DKV + PW + 3 * OP))  # f32 temporaries
    te = avail // (2 * per_edge)
    return int(max(64, min(1024, (te // 8) * 8)))


# ---------------------------------------------------------------------------
# Kernel 1: packed dense projection  y = x @ W (+ b), bf16 MXU, f32 accumulate
# ---------------------------------------------------------------------------
def _linear_kernel(x_ref, w_ref, b_ref, o_ref):
    acc = jnp.dot(x_ref[...], w_ref[...], preferred_element_type=F32) + b_ref[...]
    o_ref[...] = acc.astype(o_ref.dtype)


def packed_linear(x, w, b, *, out_dtype=F32, tm=1024):
    M, K = x.shape
    Dout = w.shape[1]
    tm = M if M <= tm else tm
    grid = (pl.cdiv(M, tm),)
    return pl.pallas_call(
        _linear_kernel,
        out_shape=jax.ShapeDtypeStruct((M, Dout), out_dtype),
        grid=grid,
        in_specs=[
            pl.BlockSpec((tm, K), lambda i: (i, 0)),
            pl.BlockSpec((K, Dout), lambda i: (0, 0)),
            pl.BlockSpec((1, Dout), lambda i: (0, 0)),
        ],
        out_specs=pl.BlockSpec((tm, Dout), lambda i: (i, 0)),
        compiler_params=pltpu.CompilerParams(
            dimension_semantics=("parallel",),
            vmem_limit_bytes=_vmem_limit_bytes(),
        ),
    )(x, w, b)


# ---------------------------------------------------------------------------
# Kernel 2 (single edge sweep, grid = (splits, edge_tiles)):
#   - build dst/src one-hots in-kernel from int32 index tiles (no O(E*N) HBM)
#   - gather Q at dst / K|V at src via exact bf16 one-hot MXU matmuls
#   - edge MLP (signed sqrt + ReLU + Eo), Oe output (lane-dense 128-wide slab)
#   - clamped scores -> exp (padded edges masked to 0)
#   - ONE fused Gd^T scatter of [ex | ex*V | ex*conn] into an output-resident
#     per-split accumulator acc[N, PW]
# ---------------------------------------------------------------------------
def _edge_sweep_kernel(dst_ref, src_ref, qs_ref, kvs_ref, ewb_ref,
                       eow_ref, eob_ref, awm_ref, expm_ref,
                       oe_ref, acc_ref, *, D, H, clamp):
    t = pl.program_id(1)

    @pl.when(t == 0)
    def _():
        acc_ref[...] = jnp.zeros_like(acc_ref)

    tE = dst_ref.shape[0]
    N = acc_ref.shape[0]
    PW = acc_ref.shape[1]
    OP = oe_ref.shape[1]

    dst = dst_ref[...]                                    # [tE, 1] int32 (pad rows = -1)
    src = src_ref[...]
    lane = lax.broadcasted_iota(jnp.int32, (tE, N), 1)
    gd = (dst == lane).astype(BF16)                       # [tE, N] one-hot(dst)
    gs = (src == lane).astype(BF16)                       # [tE, N] one-hot(src)

    # One-hot row gathers: only the lanes actually needed (Q slab / K|V slab).
    qdst = jnp.dot(gd, qs_ref[...], preferred_element_type=F32)[:, :D]   # [tE, D]
    kv = jnp.dot(gs, kvs_ref[...], preferred_element_type=F32)           # [tE, DKV]
    ksrc = kv[:, :D]
    vsrc = kv[:, D:2 * D]

    ewb = ewb_ref[...]                                    # [tE, DE] packed [Ew|Eb|pad]
    ew = ewb[:, :D]
    ebias = ewb[:, D:2 * D]

    conn1 = (qdst + ksrc) * ew
    conn2 = jnp.sqrt(jnp.maximum(conn1, 0.0)) - jnp.sqrt(jnp.maximum(-conn1, 0.0))
    conn = jnp.maximum(conn2 + ebias, 0.0)                # act = ReLU
    conn = (jnp.dot(conn.astype(BF16), eow_ref[...], preferred_element_type=F32)
            + eob_ref[...])                               # Eo linear  [tE, D]

    # Oe output, padded to a full 128-lane slab (unmasked vst).
    if OP > D:
        oe_ref[...] = jnp.concatenate(
            [conn, jnp.zeros((tE, OP - D), F32)], axis=1)
    else:
        oe_ref[...] = conn

    # Per-head attention scores (AwM packs Aw as a block-diagonal [D, H]).
    score = jnp.dot(conn.astype(BF16), awm_ref[...], preferred_element_type=F32)
    score = jnp.clip(score, -clamp, clamp)
    # Max-subtraction dropped: scores are clamped so exp is bounded.
    ex = jnp.where(dst >= 0, jnp.exp(score), 0.0)         # mask padded edges -> 0
    exb = ex.astype(BF16)                                 # same rounded value feeds num & den

    # per-head weight -> per-feature broadcast via exact 0/1 matmul
    wfull = jnp.dot(exb, expm_ref[...], preferred_element_type=F32)      # [tE, D]

    parts = [exb,
             (vsrc * wfull).astype(BF16),
             (conn * wfull).astype(BF16)]
    pad = PW - (H + 2 * D)
    if pad:
        parts.append(jnp.zeros((tE, pad), BF16))
    payload = jnp.concatenate(parts, axis=1)              # [tE, PW] bf16

    # Fused scatter-add over destination nodes: acc += Gd^T @ [ex | ex*V | ex*conn]
    acc_ref[...] += lax.dot_general(
        gd, payload, (((0,), (0,)), ((), ())), preferred_element_type=F32)


# ---------------------------------------------------------------------------
# Kernel 3 (node-tiled epilogue): reduce the per-split partials, normalize by
# the softmax denominator (pl.reciprocal on the EUP), apply the per-head BW
# block, emit On as a lane-dense 128-wide slab.
# ---------------------------------------------------------------------------
def _node_epilogue_kernel(acc_ref, expm_ref, bw_ref, on_ref, *, D, H, C):
    a = acc_ref[...]                                      # [C, tm, PW]
    s = a[0]
    for ci in range(1, C):
        s = s + a[ci]
    den = s[:, :H]
    numv = s[:, H:H + D]
    numc = s[:, H + D:H + 2 * D]

    inv = pl.reciprocal(den + 1e-16, approx=True)         # [tm, H]
    wf = jnp.dot(inv.astype(BF16), expm_ref[...], preferred_element_type=F32)  # [tm, D]
    row = jnp.dot((numc * wf).astype(BF16), bw_ref[...], preferred_element_type=F32)
    on = numv * wf + row                                  # agg + rowV@BW

    OP = on_ref.shape[1]
    if OP > D:
        on = jnp.concatenate([on, jnp.zeros((on.shape[0], OP - D), F32)], axis=1)
    on_ref[...] = on


# ---------------------------------------------------------------------------
# Full forward (glue: weight packing, edge padding, head-packed constants)
# ---------------------------------------------------------------------------
def grit_forward(x, econn, dst, src, p, *, attn_heads, attn_dim, clamp,
                 edge_tile=None, num_splits=2):
    # weight_fn='softmax', agg='add', act='relu'; attn_dropout p=0 (eval) -> identity.
    assert clamp is not None  # dropping softmax max-subtraction relies on clamped scores
    clamp = float(abs(clamp))
    N, hidden = x.shape
    E = econn.shape[0]
    H, d = attn_heads, attn_dim
    D = H * d

    DQ = _round_up(D, 128)          # Q slab lane width
    DKV = _round_up(2 * D, 128)     # K|V slab
    DE = _round_up(2 * D, 128)      # Ew|Eb slab
    OP = _round_up(D, 128)          # Oe / On lane-dense output slab
    PW = _round_up(H + 2 * D, 128)  # scatter payload [ex | ex*V | ex*conn | pad]

    vlimit = _vmem_limit_bytes()
    C = max(1, int(num_splits))
    if edge_tile is None:
        edge_tile = _auto_edge_tile(N, DQ, DKV, DE, OP, PW, vlimit)
    tE = max(8, (min(int(edge_tile), _round_up(max(E, 1), 8)) // 8) * 8)
    Ep = _round_up(max(E, 1), C * tE)
    T = Ep // (C * tE)

    # ---- fused, lane-dense projections (bf16 MXU, f32 accumulate) ----
    xb = x.astype(BF16)
    cb = econn.astype(BF16)
    WQ = jnp.zeros((hidden, DQ), F32).at[:, :D].set(p["Qw"]).astype(BF16)
    WKV = (jnp.zeros((hidden, DKV), F32)
           .at[:, :D].set(p["Kw"]).at[:, D:2 * D].set(p["Vw"]).astype(BF16))
    WE = (jnp.zeros((hidden, DE), F32)
          .at[:, :D].set(p["Eww"]).at[:, D:2 * D].set(p["Ebw"]).astype(BF16))
    b0q = jnp.zeros((1, DQ), F32)
    b0kv = jnp.zeros((1, DKV), F32)
    bE = jnp.zeros((1, DE), F32).at[:, D:2 * D].set(p["Ebb"].reshape(1, D))

    QS = packed_linear(xb, WQ, b0q, out_dtype=BF16)       # [N, DQ]  bf16
    KVS = packed_linear(xb, WKV, b0kv, out_dtype=BF16)    # [N, DKV] bf16
    EWB = packed_linear(cb, WE, bE, out_dtype=F32)        # [E, DE]  f32

    # ---- pad edge axis; padded edges get dst/src = -1 (all-zero one-hot) ----
    pad = Ep - E
    dst_i = dst.astype(jnp.int32)
    src_i = src.astype(jnp.int32)
    if pad:
        dst_i = jnp.concatenate([dst_i, jnp.full((pad,), -1, jnp.int32)])
        src_i = jnp.concatenate([src_i, jnp.full((pad,), -1, jnp.int32)])
        EWB = jnp.pad(EWB, ((0, pad), (0, 0)))
    dst2 = dst_i.reshape(Ep, 1)
    src2 = src_i.reshape(Ep, 1)

    # ---- head-packed constant matrices (bf16; 0/1 selections are exact) ----
    AwM = jnp.zeros((D, H), F32)
    BWb = jnp.zeros((D, D), F32)
    ExpM = jnp.zeros((H, D), F32)
    for h in range(H):
        AwM = AwM.at[h * d:(h + 1) * d, h].set(p["Aw"][:, h, 0])
        BWb = BWb.at[h * d:(h + 1) * d, h * d:(h + 1) * d].set(p["BW"][:, h, :])
        ExpM = ExpM.at[h, h * d:(h + 1) * d].set(1.0)
    AwM = AwM.astype(BF16)
    BWb = BWb.astype(BF16)
    ExpM = ExpM.astype(BF16)
    EoW = p["Eow"].astype(BF16)
    Eob = p["Eob"].reshape(1, D).astype(F32)

    edge_idx = lambda c, t: (c * T + t, 0)
    const2 = lambda c, t: (0, 0)

    # TODO(synk): for very large N, replace the in-kernel one-hot MXU
    # gather/scatter with true index-based DMA gathers (scalar-prefetch /
    # sorted-segment scatter) -- the O(E*N*D) MXU work still grows with N even
    # though the O(E*N) HBM traffic is gone.
    # TODO(synk): consider pipeline_mode=pl.Buffered(1) on the grid-invariant
    # operands (QS/KVS/EoW/AwM/ExpM) to halve their VMEM residency on v7x.
    kernel = functools.partial(_edge_sweep_kernel, D=D, H=H, clamp=clamp)
    oe_pad, acc = pl.pallas_call(
        kernel,
        out_shape=(jax.ShapeDtypeStruct((Ep, OP), F32),    # Oe slab
                   jax.ShapeDtypeStruct((C, N, PW), F32)), # per-split accumulators
        grid=(C, T),
        in_specs=[
            pl.BlockSpec((tE, 1), edge_idx),       # dst indices
            pl.BlockSpec((tE, 1), edge_idx),       # src indices
            pl.BlockSpec((N, DQ), const2),         # Q slab (resident)
            pl.BlockSpec((N, DKV), const2),        # K|V slab (resident)
            pl.BlockSpec((tE, DE), edge_idx),      # Ew|Eb stream
            pl.BlockSpec((D, D), const2),          # EoW
            pl.BlockSpec((1, D), const2),          # Eob
            pl.BlockSpec((D, H), const2),          # AwM
            pl.BlockSpec((H, D), const2),          # ExpM
        ],
        out_specs=(
            pl.BlockSpec((tE, OP), edge_idx),
            pl.BlockSpec((None, N, PW), lambda c, t: (c, 0, 0)),
        ),
        compiler_params=pltpu.CompilerParams(
            dimension_semantics=("parallel", "arbitrary"),
            vmem_limit_bytes=vlimit,
        ),
    )(dst2, src2, QS, KVS, EWB, EoW, Eob, AwM, ExpM)

    tmn = N if N <= 512 else 512
    epi = functools.partial(_node_epilogue_kernel, D=D, H=H, C=C)
    on_pad = pl.pallas_call(
        epi,
        out_shape=jax.ShapeDtypeStruct((N, OP), F32),
        grid=(pl.cdiv(N, tmn),),
        in_specs=[
            pl.BlockSpec((C, tmn, PW), lambda i: (0, i, 0)),
            pl.BlockSpec((H, D), lambda i: (0, 0)),
            pl.BlockSpec((D, D), lambda i: (0, 0)),
        ],
        out_specs=pl.BlockSpec((tmn, OP), lambda i: (i, 0)),
        compiler_params=pltpu.CompilerParams(
            dimension_semantics=("parallel",),
            vmem_limit_bytes=vlimit,
        ),
    )(acc, ExpM, BWb)

    return on_pad[:, :D], oe_pad[:E, :D]


# ---------------------------------------------------------------------------
# Pure-JAX reference (mirrors the PyTorch semantics) for self-check
# ---------------------------------------------------------------------------
def grit_reference(x, econn, dst, src, p, *, attn_heads, attn_dim, clamp):
    N = x.shape[0]
    H, d = attn_heads, attn_dim
    Qh = jnp.dot(x, p["Qw"], precision=HIGHEST)
    Kh = jnp.dot(x, p["Kw"], precision=HIGHEST)
    Vh = jnp.dot(x, p["Vw"], precision=HIGHEST)
    Ew = jnp.dot(econn, p["Eww"], precision=HIGHEST)
    Eb = jnp.dot(econn, p["Ebw"], precision=HIGHEST) + p["Ebb"]

    Qdst, Ksrc, Vsrc = Qh[dst], Kh[src], Vh[src]
    conn1 = (Qdst + Ksrc) * Ew
    conn2 = jnp.sqrt(jnp.maximum(conn1, 0.0)) - jnp.sqrt(jnp.maximum(-conn1, 0.0))
    conn = jnp.maximum(conn2 + Eb, 0.0)
    conn = jnp.dot(conn, p["Eow"], precision=HIGHEST) + p["Eob"]
    Oe = conn

    conn_hd = conn.reshape(-1, H, d)
    score = jnp.einsum("ehd,dhc->ehc", conn_hd, p["Aw"], precision=HIGHEST)[..., 0]
    score = jnp.clip(score, -clamp, clamp)
    mx = jax.ops.segment_max(score, dst, num_segments=N)
    ex = jnp.exp(score - mx[dst])
    sm = jax.ops.segment_sum(ex, dst, num_segments=N)
    w = ex / (sm[dst] + 1e-16)

    Vh3 = Vsrc.reshape(-1, H, d)
    agg = jax.ops.segment_sum(Vh3 * w[:, :, None], dst, num_segments=N)
    rowv = jax.ops.segment_sum(conn_hd * w[:, :, None], dst, num_segments=N)
    rowv = jnp.einsum("nhd,dhc->nhc", rowv, p["BW"], precision=HIGHEST)
    On = (agg + rowv).reshape(N, H * d)
    return On, Oe


# ---------------------------------------------------------------------------
if __name__ == "__main__":
    hidden_dim = 32
    attn_dim = 8
    attn_heads = 4
    D = attn_dim * attn_heads
    N = 16          # nodes
    E = 40          # edges (not a multiple of the edge tile -> exercises padding)
    clamp = 5.0

    key = jax.random.PRNGKey(0)
    ks = jax.random.split(key, 14)

    def xavier(k, shape):
        fan_in, fan_out = shape[0], shape[-1]
        std = (2.0 / (fan_in + fan_out)) ** 0.5
        return std * jax.random.normal(k, shape, dtype=F32)

    params = {
        "Qw": xavier(ks[0], (hidden_dim, D)),
        "Kw": xavier(ks[1], (hidden_dim, D)),
        "Vw": xavier(ks[2], (hidden_dim, D)),
        "Eww": xavier(ks[3], (hidden_dim, D)),
        "Ebw": xavier(ks[4], (hidden_dim, D)),
        "Ebb": 0.1 * jax.random.normal(ks[5], (D,), dtype=F32),
        "Eow": xavier(ks[6], (D, D)),
        "Eob": 0.1 * jax.random.normal(ks[7], (D,), dtype=F32),
        "Aw": 0.2 * jax.random.normal(ks[8], (attn_dim, attn_heads, 1), dtype=F32),
        "BW": 0.2 * jax.random.normal(ks[9], (attn_dim, attn_heads, attn_dim), dtype=F32),
    }

    x = jax.random.normal(ks[10], (N, hidden_dim), dtype=F32)
    econn = jax.random.normal(ks[11], (E, hidden_dim), dtype=F32)
    # edge index (dst, src); make sure every node appears as a destination
    dst = jnp.concatenate([
        jnp.arange(N, dtype=jnp.int32),
        jax.random.randint(ks[12], (E - N,), 0, N, dtype=jnp.int32),
    ])
    src = jax.random.randint(ks[13], (E,), 0, N, dtype=jnp.int32)

    # TODO(synk): attn_dropout is identity (p=0 / eval mode); only the
    # weight_fn='softmax' branch of the module is implemented.
    # edge_tile=16, num_splits=2 at toy scale to exercise padding, multi-tile
    # accumulation per split, and the cross-split reduction in the epilogue.
    h_out, e_out = grit_forward(x, econn, dst, src, params,
                                attn_heads=attn_heads, attn_dim=attn_dim,
                                clamp=clamp, edge_tile=16, num_splits=2)
    jax.block_until_ready((h_out, e_out))

    h_ref, e_ref = grit_reference(x, econn, dst, src, params,
                                  attn_heads=attn_heads, attn_dim=attn_dim,
                                  clamp=clamp)
    assert h_out.shape == (N, D) and e_out.shape == (E, D)
    # full bf16-operand MXU pipeline (f32 accumulation) vs the f32-HIGHEST reference
    assert jnp.allclose(h_out, h_ref, atol=4e-2, rtol=2e-2)
    assert jnp.allclose(e_out, e_ref, atol=4e-2, rtol=2e-2)

    print("KERNEL_OK")
</pallas_src>

<mosaic_0001>
module attributes {stable_mosaic.version = 11 : i64} {
  func.func @_linear_kernel(%arg0: i32, %arg1: memref<16x32xbf16, #tpu.memory_space<vmem>>, %arg2: memref<32x128xbf16, #tpu.memory_space<vmem>>, %arg3: memref<1x128xf32, #tpu.memory_space<vmem>>, %arg4: memref<16x128xbf16, #tpu.memory_space<vmem>>) attributes {dimension_semantics = [#tpu.dimension_semantics<parallel>], iteration_bounds = array<i64: 1>, scalar_prefetch = 0 : i64, scratch_operands = 0 : i64, tpu.core_type = #tpu.core_type<tc>, window_params = [{transform_indices = @transform_0, window_bounds = array<i64: 16, 32>}, {pipeline_mode = #tpu.pipeline_mode<synchronous>, transform_indices = @transform_1, window_bounds = array<i64: 32, 128>}, {pipeline_mode = #tpu.pipeline_mode<synchronous>, transform_indices = @transform_2, window_bounds = array<i64: 1, 128>}, {transform_indices = @transform_3, window_bounds = array<i64: 16, 128>}]} {
    %c0 = arith.constant 0 : index
    %c0_0 = arith.constant 0 : index
    %0 = vector.load %arg1[%c0, %c0_0] : memref<16x32xbf16, #tpu.memory_space<vmem>>, vector<16x32xbf16>
    %c0_1 = arith.constant 0 : index
    %c0_2 = arith.constant 0 : index
    %1 = vector.load %arg2[%c0_1, %c0_2] : memref<32x128xbf16, #tpu.memory_space<vmem>>, vector<32x128xbf16>
    %cst = arith.constant dense<0.000000e+00> : vector<16x128xf32>
    %2 = tpu.matmul %0, %1, %cst {dimension_numbers = #tpu.dot_dimension_numbers<[1], [0], [0], [1], [0, 0, 1, 1], [], []>} : vector<16x32xbf16>, vector<32x128xbf16>, vector<16x128xf32> -> vector<16x128xf32>
    %c0_3 = arith.constant 0 : index
    %c0_4 = arith.constant 0 : index
    %3 = vector.load %arg3[%c0_3, %c0_4] : memref<1x128xf32, #tpu.memory_space<vmem>>, vector<1x128xf32>
    %4 = vector.broadcast %3 : vector<1x128xf32> to vector<16x128xf32>
    %5 = arith.addf %2, %4 : vector<16x128xf32>
    %6 = arith.truncf %5 : vector<16x128xf32> to vector<16x128xbf16>
    %c0_5 = arith.constant 0 : index
    %c0_6 = arith.constant 0 : index
    %7 = vector.load %arg4[%c0_5, %c0_6] : memref<16x128xbf16, #tpu.memory_space<vmem>>, vector<16x128xbf16>
    tpu.vector_store %arg4[%c0_5, %c0_6], %6 {strides = array<i32>} : memref<16x128xbf16, #tpu.memory_space<vmem>>, vector<16x128xbf16>,
    return
  }
  func.func @transform_0(%arg0: i32) -> (i32, i32) {
    %c0_i32 = arith.constant 0 : i32
    %c0_i32_0 = arith.constant 0 : i32
    return %arg0, %c0_i32 : i32, i32
  }
  func.func @transform_1(%arg0: i32) -> (i32, i32) {
    %c0_i32 = arith.constant 0 : i32
    %c0_i32_0 = arith.constant 0 : i32
    %c0_i32_1 = arith.constant 0 : i32
    return %c0_i32, %c0_i32_0 : i32, i32
  }
  func.func @transform_2(%arg0: i32) -> (i32, i32) {
    %c0_i32 = arith.constant 0 : i32
    %c0_i32_0 = arith.constant 0 : i32
    %c0_i32_1 = arith.constant 0 : i32
    return %c0_i32, %c0_i32_0 : i32, i32
  }
  func.func @transform_3(%arg0: i32) -> (i32, i32) {
    %c0_i32 = arith.constant 0 : i32
    %c0_i32_0 = arith.constant 0 : i32
    return %arg0, %c0_i32 : i32, i32
  }
}

</mosaic_0001>

<llo_original>
// kernel: tpu_custom_call.1
$region0: #{tpu_custom_call.1}
  #allocation0 [shape = 'u32[]', space=smem, size = 0x4, offset = 0x4, fixed_abs, tag = 'smem constant byte address 0x4 - core index']
  #allocation1 [shape = 'u32[144,128]{1,0:T(1,128)}', space=vmem, size = 0x12000, scoped, tag = 'internal scratch']
  %s0 = inlined_call_operand.hbm [shape: bf16[16,32], index: 0, kind: input, shape index: {}]
  %s1 = inlined_call_operand.hbm [shape: bf16[32,128], index: 1, kind: input, shape index: {}]
  %s2 = inlined_call_operand.vmem [shape: f32[1,128], index: 2, kind: input, shape index: {}]
  %s3 = inlined_call_operand.hbm [shape: bf16[16,128], index: 3, kind: output, shape index: {}]
  %s4 = sld [smem:[#allocation0]]
  $region30: #{tpu_custom_call.1} parent=0
    _
  %s6 = ssub.s32 1, %s4
  %s7 = scalar_select 0, %s6, %s4
  $region1: #{tpu_custom_call.1} parent=0
    #allocation2 [shape = 'u8[4096]{0}', space=vmem, size = 0x1000, scoped, tag = 'input window, operand 0, single buffered']
    #allocation3 [shape = 's32[1]{0}', space=sflag, size = 0x4, scoped, tag = 'scoped memory for tpu_custom_call.1']
    #allocation4 [shape = 's32[1]{0}', space=sflag, size = 0x4, scoped, tag = 'scoped memory for tpu_custom_call.1']
    #allocation5 [shape = 'u8[8192]{0}', space=vmem, size = 0x2000, scoped, tag = 'input window, operand 1, single buffered']
    #allocation6 [shape = 's32[1]{0}', space=sflag, size = 0x4, scoped, tag = 'scoped memory for tpu_custom_call.1']
    #allocation7 [shape = 'u8[4096]{0}', space=vmem, size = 0x1000, scoped, tag = 'output window, operand 0, single buffered']
    %8 = vsyncpa [#allocation3], 0
    %9 = vsyncpa [#allocation6], 0
    %10 = vsyncpa [#allocation4], 0
    // Predicated region
    $region2: #{tpu_custom_call.1} parent=1 // pred_check
      _
    $region3: #{tpu_custom_call.1} parent=1 // pred_check_branch
      %12 = sbr.rel (0) target = $region5
    $region4: #{tpu_custom_call.1} parent=1 // pred_region
      %s14 = ssub.s32 128, 128
      %15 = vsyncadd [#allocation3], %s14
      %s16 = sshll.u32 [#allocation2], 4
      %s17 = int_to_ptr.vmem [resolvable:$true] %s16
      %22 = dma.hbm_to_vmem [thread:$0]  %s0, 128, %s17, [#allocation3], 64, 64, 4
    $region5: #{tpu_custom_call.1} parent=1 // pred_fallthru
      _
    // Predicated region
    $region6: #{tpu_custom_call.1} parent=1 // pred_check
      _
    $region7: #{tpu_custom_call.1} parent=1 // pred_check_branch
      %24 = sbr.rel (0) target = $region9
    $region8: #{tpu_custom_call.1} parent=1 // pred_region
      %s26 = ssub.s32 256, 256
      %27 = vsyncadd [#allocation6], %s26
      %s28 = sshll.u32 [#allocation5], 4
      %s29 = int_to_ptr.vmem [resolvable:$true] %s28
      %34 = dma.hbm_to_vmem [thread:$0]  %s1, 256, %s29, [#allocation6], 64, 64, 4
    $region9: #{tpu_custom_call.1} parent=1 // pred_fallthru
      _
    // Predicated region
    $region10: #{tpu_custom_call.1} parent=1 // pred_check
      _
    $region11: #{tpu_custom_call.1} parent=1 // pred_check_branch
      %36 = sbr.rel (0) target = $region13
    $region12: #{tpu_custom_call.1} parent=1 // pred_region
      _
    $region13: #{tpu_custom_call.1} parent=1 // pred_fallthru
      _
    // Predicated region
    $region14: #{tpu_custom_call.1} parent=1 // pred_check
      _
    $region15: #{tpu_custom_call.1} parent=1 // pred_check_branch
      %38 = sbr.rel (0) target = $region17
    $region16: #{tpu_custom_call.1} parent=1 // pred_region
      %39 = dma.done [#allocation3], 128
    $region17: #{tpu_custom_call.1} parent=1 // pred_fallthru
      _
    // Predicated region
    $region18: #{tpu_custom_call.1} parent=1 // pred_check
      _
    $region19: #{tpu_custom_call.1} parent=1 // pred_check_branch
      %41 = sbr.rel (0) target = $region21
    $region20: #{tpu_custom_call.1} parent=1 // pred_region
      %42 = dma.done [#allocation6], 256
    $region21: #{tpu_custom_call.1} parent=1 // pred_fallthru
      _
    %v44 = vld [vmem:[#allocation2] sm:$0xf]
    %v45 = vld [vmem:[#allocation2 + $0x4] sm:$0xf]
    %v46 = vld [vmem:[#allocation5] sm:$0xf]
    %v47 = vld [vmem:[#allocation5 + $0x4] sm:$0xf]
    %v48 = vld [vmem:[#allocation5 + $0x8] sm:$0xf]
    %v49 = vld [vmem:[#allocation5 + $0xc] sm:$0xf]
    %v50 = vld [vmem:[%s2] sm:$0x1]
    %v52 = vlaneseq
    %v53 = vshrl.u32 %v52, 7
    %v54 = vsub.s32 0, %v53
    %v55 = vrot.slane %v50, %v54
    %v59 = vunpack.c.l.b16 %v44
    %v60 = vunpack.c.l.b16 %v45
    %v61 = vpack.c.b16 %v60, %v59
    %v66 = vunpack.c.l.b16 %v46
    %v67 = vunpack.c.l.b16 %v47
    %v68 = vunpack.c.l.b16 %v48
    %v69 = vunpack.c.l.b16 %v49
    %v70 = vpack.c.b16 %v67, %v66
    %v71 = vpack.c.b16 %v69, %v68
    %vm74 = vcmask 261120
    %v76 = vsel %vm74, %v61, 0
    %78 = vmatprep.subr.bf16.mxu0 0
    %79 = vmatpush1.bf16.msra.mxu0 0
    %80 = vmatprep.subr.bf16.mxu0 0
    %81 = vmatpush1.bf16.msra.mxu0 0
    %82 = vmatprep.subr.bf16.mxu0 0
    %83 = vmatpush1.bf16.msra.mxu0 0
    %84 = vmatprep.subr.bf16.mxu0 0
    %85 = vmatpush1.bf16.msra.mxu0 0
    %86 = vmatprep.subr.bf16.mxu0 0
    %87 = vmatpush1.bf16.msra.mxu0 0
    %88 = vmatprep.subr.bf16.mxu0 0
    %89 = vmatpush1.bf16.msra.mxu0 0
    %90 = vmatprep.subr.bf16.mxu0 0
    %91 = vmatpush1.bf16.msra.mxu0 %v71
    %92 = vmatprep.subr.bf16.mxu0 0
    %93 = vmatpush1.bf16.msra.mxu0 %v70
    %94 = vmatprep.subr.bf16.mxu0 0
    %95 = vmatpush2.bf16.msra.mxu0 0
    %96 = vmatprep.subr.bf16.mxu0 0
    %97 = vmatpush2.bf16.msra.mxu0 0
    %98 = vmatprep.subr.bf16.mxu0 0
    %99 = vmatpush2.bf16.msra.mxu0 0
    %100 = vmatprep.subr.bf16.mxu0 0
    %101 = vmatpush2.bf16.msra.mxu0 0
    %102 = vmatprep.subr.bf16.mxu0 0
    %103 = vmatpush2.bf16.msra.mxu0 0
    %104 = vmatprep.subr.bf16.mxu0 0
    %105 = vmatpush2.bf16.msra.mxu0 0
    %106 = vmatprep.subr.bf16.mxu0 0
    %107 = vmatpush2.bf16.msra.mxu0 0
    %108 = vmatprep.subr.bf16.mxu0 0
    %109 = vmatpush2.bf16.msra.mxu0 0
    %110 = vmatprep.mubr.bf16.mxu0 0
    %111 = vmatmul.mubr.bf16.gmra.mxu0 %v76
    %v112 = vpop.f32.mrf.mxu0
    %v113 = vadd.f32 %v55, %v112
    %v114 = vpop.f32.mrf.mxu0
    %v115 = vpop.f32.mrf.mxu0
    %v116 = vadd.f32 %v55, %v115
    %v117 = vpop.f32.mrf.mxu0
    %118 = vdwg.mxu0
    %v119 = vpack.c.bf16 %v116, %v113
    %v121 = vunpack.c.l.b16 %v119
    %v122 = vunpack.c.h.b16 %v119
    %v123 = vpack.c.b16 %v121, %v121
    %v124 = vpack.c.b16 %v122, %v122
    %127 = vst [vmem:[#allocation7] sm:$0xf] %v123
    %128 = vst [vmem:[#allocation7 + $0x4] sm:$0xf] %v124
    // Predicated region
    $region22: #{tpu_custom_call.1} parent=1 // pred_check
      _
    $region23: #{tpu_custom_call.1} parent=1 // pred_check_branch
      %130 = sbr.rel (0) target = $region25
    $region24: #{tpu_custom_call.1} parent=1 // pred_region
      %s132 = ssub.s32 128, 128
      %133 = vsyncadd [#allocation4], %s132
      %s134 = sshll.u32 [#allocation7], 4
      %s135 = int_to_ptr.vmem [resolvable:$true] %s134
      %140 = dma.vmem_to_hbm [thread:$0]  %s135, 128, %s3, [#allocation4], 64, 64, 4
    $region25: #{tpu_custom_call.1} parent=1 // pred_fallthru
      _
    // Predicated region
    $region26: #{tpu_custom_call.1} parent=1 // pred_check
      _
    $region27: #{tpu_custom_call.1} parent=1 // pred_check_branch
      %142 = sbr.rel (0) target = $region29
    $region28: #{tpu_custom_call.1} parent=1 // pred_region
      %143 = dma.done [#allocation4], 128
    $region29: #{tpu_custom_call.1} parent=1 // pred_fallthru
      _
    %144 = vsyncpa [#allocation3], 1
    %145 = vsyncpa [#allocation6], 1
    %146 = vsyncpa [#allocation4], 1

</llo_original>
